<compile_context>
chip_gen: v7x
topology: tpu7x:2x2x1
jax: 0.10.0
libtpu: 0.0.40
codegen_flags: <defaults>
</compile_context>

<pallas_src>
import functools

import jax
import jax.numpy as jnp
from jax import lax
from jax.experimental import pallas as pl
from jax.experimental.pallas import tpu as pltpu


def _gru_kernel(gi_ref, eps_ref, h0_ref, w_hh_ref, b_hh_ref, y_ref, h_scr,
                *, time_block, hidden, mxu_dtype, unroll):
    """One grid step = `time_block` GRU timesteps for one n_seq block.

    gi_ref : (Tb, ns, 3H)  precomputed x @ W_ih + b_ih (gate order r, z, n)
    eps_ref: (Tb, ns, 1)   episode starts
    h0_ref : (ns, H)       initial hidden for this n_seq block
    w_hh_ref: (H, 3H)      fused recurrent weights
    b_hh_ref: (1, 3H)      fused recurrent biases
    y_ref  : (Tb, ns, H)   per-step hidden outputs
    h_scr  : (ns, H) f32   hidden state carried across time blocks
    """
    t_blk = pl.program_id(1)                      # serial time-block axis

    @pl.when(t_blk == 0)
    def _():
        h_scr[...] = h0_ref[...].astype(jnp.float32)

    H = hidden
    w_hh = w_hh_ref[...].astype(mxu_dtype)        # single fused RHS, (H, 3H)
    b_hh = b_hh_ref[...]                          # (1, 3H), f32

    def step(i, h):
        # Reset hidden at episode boundaries: (1 - episode_start) * h.
        eps = eps_ref[i]                          # (ns, 1)
        h = h * (1.0 - eps)
        gi = gi_ref[i]                            # (ns, 3H), precomputed f32
        # Only the recurrent matmul remains on the serial critical path.
        gh = jnp.dot(h.astype(mxu_dtype), w_hh,
                     preferred_element_type=jnp.float32) + b_hh
        # PyTorch GRU gate equations (gate order r, z, n); math stays in f32.
        r = jax.nn.sigmoid(gi[:, :H] + gh[:, :H])
        z = jax.nn.sigmoid(gi[:, H:2 * H] + gh[:, H:2 * H])
        n = jnp.tanh(gi[:, 2 * H:] + r * gh[:, 2 * H:])
        h_new = (1.0 - z) * n + z * h
        # TODO(synk): for H not a multiple of 128 this store is lane-masked;
        # a lane-dense (Tb, n_seq*H) output slab would speed up the store path.
        y_ref[i] = h_new.astype(y_ref.dtype)
        return h_new

    h_final = lax.fori_loop(0, time_block, step, h_scr[...], unroll=unroll)
    h_scr[...] = h_final


def gru_process_sequence(x_seq, eps_seq, h0, w_ih, w_hh, b_ih, b_hh, *,
                         time_block=None, seq_block=None,
                         mxu_dtype=jnp.float32):
    """x_seq: (T, n_seq, D), eps_seq: (T, n_seq, 1), h0: (1, n_seq, H).
    w_ih: (3, D, H), w_hh: (3, H, H), b_ih/b_hh: (3, 1, H)  (gate order r,z,n).
    Returns (y: (T, n_seq, H), hn: (1, n_seq, H))."""
    T, n_seq, D = x_seq.shape
    H = h0.shape[-1]
    G = 3 * H

    # --- gate fusion: (3,D,H)->(D,3H), (3,H,H)->(H,3H), biases->(3H,).
    w_ih_cat = jnp.concatenate([w_ih[0], w_ih[1], w_ih[2]], axis=1)
    w_hh_cat = jnp.concatenate([w_hh[0], w_hh[1], w_hh[2]], axis=1)
    b_ih_cat = b_ih.reshape(1, 1, G)
    b_hh_cat = b_hh.reshape(1, G)

    # --- hoist input-to-hidden matmuls: one big (T*n_seq, D) x (D, 3H) matmul
    # done by XLA outside the serial recurrence (MXU-friendly M and N).
    gi = jnp.dot(x_seq.reshape(T * n_seq, D).astype(mxu_dtype),
                 w_ih_cat.astype(mxu_dtype),
                 preferred_element_type=jnp.float32)
    gi = gi.reshape(T, n_seq, G) + b_ih_cat

    # --- time blocking: Tb timesteps per grid step.  Small blocks keep VMEM
    # usage well under the default scoped limit even on v7x (64 MiB physical).
    Tb = time_block if time_block is not None else min(T, 32)
    Tb = max(1, min(Tb, T))
    T_pad = -(-T // Tb) * Tb
    if T_pad != T:
        # Padded tail steps compute throwaway hidden states; eps padding = 0.
        # They are sliced off below (hn is y[T-1]), so correctness is unchanged.
        gi = jnp.pad(gi, ((0, T_pad - T), (0, 0), (0, 0)))
        eps_seq = jnp.pad(eps_seq, ((0, T_pad - T), (0, 0), (0, 0)))

    # --- optional n_seq split (v7x megacore): leading "parallel" grid axis.
    # Each sequence block carries its own hidden scratch (re-init at t_blk==0).
    ns_blk = seq_block if seq_block is not None else n_seq
    if n_seq % ns_blk != 0 or (ns_blk != n_seq and ns_blk % 8 != 0):
        ns_blk = n_seq
    grid = (n_seq // ns_blk, T_pad // Tb)

    kernel = functools.partial(
        _gru_kernel, time_block=Tb, hidden=H, mxu_dtype=mxu_dtype,
        unroll=(Tb <= 8))

    grid_spec = pltpu.PrefetchScalarGridSpec(
        num_scalar_prefetch=0,
        grid=grid,
        in_specs=[
            pl.BlockSpec((Tb, ns_blk, G), lambda s, t: (t, s, 0)),   # gi
            pl.BlockSpec((Tb, ns_blk, 1), lambda s, t: (t, s, 0)),   # eps
            pl.BlockSpec((ns_blk, H),     lambda s, t: (s, 0)),      # h0
            pl.BlockSpec((H, G),          lambda s, t: (0, 0)),      # W_hh
            pl.BlockSpec((1, G),          lambda s, t: (0, 0)),      # b_hh
        ],
        out_specs=pl.BlockSpec((Tb, ns_blk, H), lambda s, t: (t, s, 0)),
        scratch_shapes=[pltpu.VMEM((ns_blk, H), jnp.float32)],
    )

    y_pad = pl.pallas_call(
        kernel,
        out_shape=jax.ShapeDtypeStruct((T_pad, n_seq, H), jnp.float32),
        grid_spec=grid_spec,
        compiler_params=pltpu.CompilerParams(
            dimension_semantics=("parallel", "arbitrary")),
    )(gi, eps_seq.astype(jnp.float32), h0[0].astype(jnp.float32),
      w_hh_cat.astype(jnp.float32), b_hh_cat.astype(jnp.float32))

    y = y_pad[:T]
    hn = y_pad[T - 1][None]        # final hidden state == last output row
    return y, hn


def basenet_forward(features, params, lstm_states=None, episode_starts=None,
                    mxu_dtype=jnp.float32):
    """Mirrors BaseNet.forward for a concrete GRU-backed `_forward_common`.

    features: (B, D) flat features, B = n_seq * seq_len (PyTorch ordering).
    lstm_states: optional (h, h) with h of shape (1, n_seq, H).
    episode_starts: optional (B,) float array.
    Returns (latent_policy, latent_value, (h_n, h_n)).
    """
    w_ih, w_hh, b_ih, b_hh, n_seq, H = (
        params["w_ih"], params["w_hh"], params["b_ih"], params["b_hh"],
        params["n_seq"], params["hidden_size"])
    B, D = features.shape

    if lstm_states is None:
        h0 = jnp.zeros((1, n_seq, H), jnp.float32)
    else:
        h0 = lstm_states[0]
    if episode_starts is None:
        episode_starts = jnp.zeros((B,), jnp.float32)

    T = B // n_seq
    # features.reshape((n_seq, -1, input_size)).swapaxes(0, 1) -> (T, n_seq, D)
    x_seq = jnp.swapaxes(features.reshape(n_seq, T, D), 0, 1)
    eps_seq = jnp.swapaxes(episode_starts.reshape(n_seq, T), 0, 1)[..., None]

    y, hn = gru_process_sequence(x_seq, eps_seq, h0, w_ih, w_hh, b_ih, b_hh,
                                 mxu_dtype=mxu_dtype)

    # flatten(output.transpose(0, 1), 0, 1) -> (B, H)
    latents = jnp.swapaxes(y, 0, 1).reshape(B, H)
    lstm_states_out = (hn, hn)

    # TODO(synk): _forward_policy / _forward_value are abstract in BaseNet
    # (NotImplementedError); identity heads are used here.
    latent_policy = latents
    latent_value = latents
    return latent_policy, latent_value, lstm_states_out


def _gru_reference(x_seq, eps_seq, h0, w_ih, w_hh, b_ih, b_hh):
    """Pure-JAX reference (lax.scan) of the same GRU recurrence."""
    def step(h, inp):
        x, eps = inp
        h = h * (1.0 - eps)
        gi = [x @ w_ih[g] + b_ih[g] for g in range(3)]
        gh = [h @ w_hh[g] + b_hh[g] for g in range(3)]
        r = jax.nn.sigmoid(gi[0] + gh[0])
        z = jax.nn.sigmoid(gi[1] + gh[1])
        n = jnp.tanh(gi[2] + r * gh[2])
        h_new = (1.0 - z) * n + z * h
        return h_new, h_new

    hn, y = lax.scan(step, h0[0], (x_seq, eps_seq))
    return y, hn[None]


if __name__ == "__main__":
    key = jax.random.PRNGKey(0)

    # Small shapes consistent with the forward: seq=8 total rows, hidden=32.
    n_seq = 2        # number of parallel sequences (batch of envs)
    T = 4            # time steps per sequence
    B = n_seq * T    # flat feature rows
    D = 16           # rnn.input_size
    H = 32           # rnn.hidden_size

    k_feat, k_eps, k_h0, k_wih, k_whh, k_bih, k_bhh = jax.random.split(key, 7)

    features = jax.random.normal(k_feat, (B, D), jnp.float32)
    # Mix of zero / nonzero episode starts to exercise the reset path.
    episode_starts = (jax.random.uniform(k_eps, (B,)) > 0.7).astype(jnp.float32)
    h0 = jax.random.normal(k_h0, (1, n_seq, H), jnp.float32) * 0.1

    # PyTorch-style uniform(-1/sqrt(H), 1/sqrt(H)) GRU params, gate order r,z,n;
    # stored per-gate transposed as (3, D, H) / (3, H, H) for x @ W layouts.
    bound = 1.0 / jnp.sqrt(jnp.float32(H))
    w_ih = jax.random.uniform(k_wih, (3, D, H), jnp.float32, -bound, bound)
    w_hh = jax.random.uniform(k_whh, (3, H, H), jnp.float32, -bound, bound)
    b_ih = jax.random.uniform(k_bih, (3, 1, H), jnp.float32, -bound, bound)
    b_hh = jax.random.uniform(k_bhh, (3, 1, H), jnp.float32, -bound, bound)

    params = dict(w_ih=w_ih, w_hh=w_hh, b_ih=b_ih, b_hh=b_hh,
                  n_seq=n_seq, hidden_size=H)

    # --- f32 MXU path (strict check against pure-JAX reference) -------------
    pol, val, (h_n, _) = basenet_forward(
        features, params, lstm_states=(h0, h0), episode_starts=episode_starts)
    pol = jax.block_until_ready(pol)
    h_n = jax.block_until_ready(h_n)

    x_seq = jnp.swapaxes(features.reshape(n_seq, T, D), 0, 1)
    eps_seq = jnp.swapaxes(episode_starts.reshape(n_seq, T), 0, 1)[..., None]
    y_ref, hn_ref = _gru_reference(x_seq, eps_seq, h0, w_ih, w_hh, b_ih, b_hh)
    lat_ref = jnp.swapaxes(y_ref, 0, 1).reshape(B, H)

    assert pol.shape == (B, H) and val.shape == (B, H) and h_n.shape == (1, n_seq, H)
    assert jnp.allclose(pol, lat_ref, atol=1e-5, rtol=1e-5)
    assert jnp.allclose(h_n, hn_ref, atol=1e-5, rtol=1e-5)

    # --- bf16 MXU path (v6e/v7x optimization; looser tolerance) --------------
    pol_bf, _, (h_n_bf, _) = basenet_forward(
        features, params, lstm_states=(h0, h0), episode_starts=episode_starts,
        mxu_dtype=jnp.bfloat16)
    pol_bf = jax.block_until_ready(pol_bf)
    assert jnp.allclose(pol_bf, lat_ref, atol=5e-2, rtol=5e-2)
    assert jnp.allclose(h_n_bf, hn_ref, atol=5e-2, rtol=5e-2)

    print("KERNEL_OK")
</pallas_src>

<mosaic_0001>
module attributes {stable_mosaic.version = 11 : i64} {
  func.func @_gru_kernel(%arg0: i32, %arg1: i32, %arg2: memref<4x2x96xf32, #tpu.memory_space<vmem>>, %arg3: memref<4x2x1xf32, #tpu.memory_space<vmem>>, %arg4: memref<2x32xf32, #tpu.memory_space<vmem>>, %arg5: memref<32x96xf32, #tpu.memory_space<vmem>>, %arg6: memref<1x96xf32, #tpu.memory_space<vmem>>, %arg7: memref<4x2x32xf32, #tpu.memory_space<vmem>>, %arg8: memref<2x32xf32, #tpu.memory_space<vmem>>) attributes {dimension_semantics = [#tpu.dimension_semantics<parallel>, #tpu.dimension_semantics<arbitrary>], iteration_bounds = array<i64: 1, 1>, scalar_prefetch = 0 : i64, scratch_operands = 1 : i64, tpu.core_type = #tpu.core_type<tc>, window_params = [{transform_indices = @transform_0, window_bounds = array<i64: 4, 2, 96>}, {transform_indices = @transform_1, window_bounds = array<i64: 4, 2, 1>}, {transform_indices = @transform_2, window_bounds = array<i64: 2, 32>}, {pipeline_mode = #tpu.pipeline_mode<synchronous>, transform_indices = @transform_3, window_bounds = array<i64: 32, 96>}, {pipeline_mode = #tpu.pipeline_mode<synchronous>, transform_indices = @transform_4, window_bounds = array<i64: 1, 96>}, {transform_indices = @transform_5, window_bounds = array<i64: 4, 2, 32>}]} {
    %c0_i32 = arith.constant 0 : i32
    %0 = arith.cmpi eq, %arg1, %c0_i32 : i32
    %1 = arith.extui %0 : i1 to i32
    %c0_i32_0 = arith.constant 0 : i32
    %2 = arith.cmpi ne, %1, %c0_i32_0 : i32
    scf.if %2 {
      %c0_52 = arith.constant 0 : index
      %c0_53 = arith.constant 0 : index
      %179 = vector.load %arg4[%c0_52, %c0_53] : memref<2x32xf32, #tpu.memory_space<vmem>>, vector<2x32xf32>
      %c0_54 = arith.constant 0 : index
      %c0_55 = arith.constant 0 : index
      %180 = vector.load %arg8[%c0_54, %c0_55] : memref<2x32xf32, #tpu.memory_space<vmem>>, vector<2x32xf32>
      tpu.vector_store %arg8[%c0_54, %c0_55], %179 {strides = array<i32>} : memref<2x32xf32, #tpu.memory_space<vmem>>, vector<2x32xf32>,
    } else {
    }
    %c0 = arith.constant 0 : index
    %c0_1 = arith.constant 0 : index
    %3 = vector.load %arg5[%c0, %c0_1] : memref<32x96xf32, #tpu.memory_space<vmem>>, vector<32x96xf32>
    %c0_2 = arith.constant 0 : index
    %c0_3 = arith.constant 0 : index
    %4 = vector.load %arg6[%c0_2, %c0_3] : memref<1x96xf32, #tpu.memory_space<vmem>>, vector<1x96xf32>
    %c0_4 = arith.constant 0 : index
    %c0_5 = arith.constant 0 : index
    %5 = vector.load %arg8[%c0_4, %c0_5] : memref<2x32xf32, #tpu.memory_space<vmem>>, vector<2x32xf32>
    %c0_i32_6 = arith.constant 0 : i32
    %6 = arith.index_cast %c0_i32_6 : i32 to index
    %c0_7 = arith.constant 0 : index
    %c0_8 = arith.constant 0 : index
    %7 = vector.load %arg3[%6, %c0_7, %c0_8] : memref<4x2x1xf32, #tpu.memory_space<vmem>>, vector<1x2x1xf32>
    %8 = vector.shape_cast %7 : vector<1x2x1xf32> to vector<2x1xf32>
    %cst = arith.constant 1.000000e+00 : f32
    %9 = vector.broadcast %cst : f32 to vector<2x1xf32>
    %10 = arith.subf %9, %8 : vector<2x1xf32>
    %11 = vector.broadcast %10 : vector<2x1xf32> to vector<2x32xf32>
    %12 = arith.mulf %5, %11 : vector<2x32xf32>
    %13 = arith.index_cast %c0_i32_6 : i32 to index
    %c0_9 = arith.constant 0 : index
    %c0_10 = arith.constant 0 : index
    %14 = vector.load %arg2[%13, %c0_9, %c0_10] : memref<4x2x96xf32, #tpu.memory_space<vmem>>, vector<1x2x96xf32>
    %15 = vector.shape_cast %14 : vector<1x2x96xf32> to vector<2x96xf32>
    %cst_11 = arith.constant dense<0.000000e+00> : vector<2x96xf32>
    %16 = tpu.matmul %12, %3, %cst_11 {dimension_numbers = #tpu.dot_dimension_numbers<[1], [0], [0], [1], [0, 0, 1, 1], [], []>} : vector<2x32xf32>, vector<32x96xf32>, vector<2x96xf32> -> vector<2x96xf32>
    %17 = vector.broadcast %4 : vector<1x96xf32> to vector<2x96xf32>
    %18 = arith.addf %16, %17 : vector<2x96xf32>
    %19 = vector.extract_strided_slice %15 {offsets = [0, 0], sizes = [2, 32], strides = [1, 1]} : vector<2x96xf32> to vector<2x32xf32>
    %20 = vector.extract_strided_slice %18 {offsets = [0, 0], sizes = [2, 32], strides = [1, 1]} : vector<2x96xf32> to vector<2x32xf32>
    %21 = arith.addf %19, %20 : vector<2x32xf32>
    %22 = arith.negf %21 : vector<2x32xf32>
    %23 = math.exp %22 : vector<2x32xf32>
    %cst_12 = arith.constant 1.000000e+00 : f32
    %24 = vector.broadcast %cst_12 : f32 to vector<2x32xf32>
    %25 = arith.addf %24, %23 : vector<2x32xf32>
    %26 = arith.divf %24, %25 : vector<2x32xf32>
    %27 = vector.extract_strided_slice %15 {offsets = [0, 32], sizes = [2, 32], strides = [1, 1]} : vector<2x96xf32> to vector<2x32xf32>
    %28 = vector.extract_strided_slice %18 {offsets = [0, 32], sizes = [2, 32], strides = [1, 1]} : vector<2x96xf32> to vector<2x32xf32>
    %29 = arith.addf %27, %28 : vector<2x32xf32>
    %30 = arith.negf %29 : vector<2x32xf32>
    %31 = math.exp %30 : vector<2x32xf32>
    %cst_13 = arith.constant 1.000000e+00 : f32
    %32 = vector.broadcast %cst_13 : f32 to vector<2x32xf32>
    %33 = arith.addf %32, %31 : vector<2x32xf32>
    %34 = arith.divf %32, %33 : vector<2x32xf32>
    %35 = vector.extract_strided_slice %15 {offsets = [0, 64], sizes = [2, 32], strides = [1, 1]} : vector<2x96xf32> to vector<2x32xf32>
    %36 = vector.extract_strided_slice %18 {offsets = [0, 64], sizes = [2, 32], strides = [1, 1]} : vector<2x96xf32> to vector<2x32xf32>
    %37 = arith.mulf %26, %36 : vector<2x32xf32>
    %38 = arith.addf %35, %37 : vector<2x32xf32>
    %39 = math.tanh %38 : vector<2x32xf32>
    %cst_14 = arith.constant 1.000000e+00 : f32
    %40 = vector.broadcast %cst_14 : f32 to vector<2x32xf32>
    %41 = arith.subf %40, %34 : vector<2x32xf32>
    %42 = arith.mulf %41, %39 : vector<2x32xf32>
    %43 = arith.mulf %34, %12 : vector<2x32xf32>
    %44 = arith.addf %42, %43 : vector<2x32xf32>
    %45 = arith.index_cast %c0_i32_6 : i32 to index
    %c0_15 = arith.constant 0 : index
    %c0_16 = arith.constant 0 : index
    %46 = vector.load %arg7[%45, %c0_15, %c0_16] : memref<4x2x32xf32, #tpu.memory_space<vmem>>, vector<1x2x32xf32>
    %47 = vector.shape_cast %46 : vector<1x2x32xf32> to vector<2x32xf32>
    %48 = vector.shape_cast %44 : vector<2x32xf32> to vector<1x2x32xf32>
    tpu.vector_store %arg7[%45, %c0_15, %c0_16], %48 {strides = array<i32>} : memref<4x2x32xf32, #tpu.memory_space<vmem>>, vector<1x2x32xf32>,
    %c1_i32 = arith.constant 1 : i32
    %49 = arith.index_cast %c1_i32 : i32 to index
    %c0_17 = arith.constant 0 : index
    %c0_18 = arith.constant 0 : index
    %50 = vector.load %arg3[%49, %c0_17, %c0_18] : memref<4x2x1xf32, #tpu.memory_space<vmem>>, vector<1x2x1xf32>
    %51 = vector.shape_cast %50 : vector<1x2x1xf32> to vector<2x1xf32>
    %cst_19 = arith.constant 1.000000e+00 : f32
    %52 = vector.broadcast %cst_19 : f32 to vector<2x1xf32>
    %53 = arith.subf %52, %51 : vector<2x1xf32>
    %54 = vector.broadcast %53 : vector<2x1xf32> to vector<2x32xf32>
    %55 = arith.mulf %44, %54 : vector<2x32xf32>
    %56 = arith.index_cast %c1_i32 : i32 to index
    %c0_20 = arith.constant 0 : index
    %c0_21 = arith.constant 0 : index
    %57 = vector.load %arg2[%56, %c0_20, %c0_21] : memref<4x2x96xf32, #tpu.memory_space<vmem>>, vector<1x2x96xf32>
    %58 = vector.shape_cast %57 : vector<1x2x96xf32> to vector<2x96xf32>
    %cst_22 = arith.constant dense<0.000000e+00> : vector<2x96xf32>
    %59 = tpu.matmul %55, %3, %cst_22 {dimension_numbers = #tpu.dot_dimension_numbers<[1], [0], [0], [1], [0, 0, 1, 1], [], []>} : vector<2x32xf32>, vector<32x96xf32>, vector<2x96xf32> -> vector<2x96xf32>
    %60 = vector.broadcast %4 : vector<1x96xf32> to vector<2x96xf32>
    %61 = arith.addf %59, %60 : vector<2x96xf32>
    %62 = vector.extract_strided_slice %58 {offsets = [0, 0], sizes = [2, 32], strides = [1, 1]} : vector<2x96xf32> to vector<2x32xf32>
    %63 = vector.extract_strided_slice %61 {offsets = [0, 0], sizes = [2, 32], strides = [1, 1]} : vector<2x96xf32> to vector<2x32xf32>
    %64 = arith.addf %62, %63 : vector<2x32xf32>
    %65 = arith.negf %64 : vector<2x32xf32>
    %66 = math.exp %65 : vector<2x32xf32>
    %cst_23 = arith.constant 1.000000e+00 : f32
    %67 = vector.broadcast %cst_23 : f32 to vector<2x32xf32>
    %68 = arith.addf %67, %66 : vector<2x32xf32>
    %69 = arith.divf %67, %68 : vector<2x32xf32>
    %70 = vector.extract_strided_slice %58 {offsets = [0, 32], sizes = [2, 32], strides = [1, 1]} : vector<2x96xf32> to vector<2x32xf32>
    %71 = vector.extract_strided_slice %61 {offsets = [0, 32], sizes = [2, 32], strides = [1, 1]} : vector<2x96xf32> to vector<2x32xf32>
    %72 = arith.addf %70, %71 : vector<2x32xf32>
    %73 = arith.negf %72 : vector<2x32xf32>
    %74 = math.exp %73 : vector<2x32xf32>
    %cst_24 = arith.constant 1.000000e+00 : f32
    %75 = vector.broadcast %cst_24 : f32 to vector<2x32xf32>
    %76 = arith.addf %75, %74 : vector<2x32xf32>
    %77 = arith.divf %75, %76 : vector<2x32xf32>
    %78 = vector.extract_strided_slice %58 {offsets = [0, 64], sizes = [2, 32], strides = [1, 1]} : vector<2x96xf32> to vector<2x32xf32>
    %79 = vector.extract_strided_slice %61 {offsets = [0, 64], sizes = [2, 32], strides = [1, 1]} : vector<2x96xf32> to vector<2x32xf32>
    %80 = arith.mulf %69, %79 : vector<2x32xf32>
    %81 = arith.addf %78, %80 : vector<2x32xf32>
    %82 = math.tanh %81 : vector<2x32xf32>
    %cst_25 = arith.constant 1.000000e+00 : f32
    %83 = vector.broadcast %cst_25 : f32 to vector<2x32xf32>
    %84 = arith.subf %83, %77 : vector<2x32xf32>
    %85 = arith.mulf %84, %82 : vector<2x32xf32>
    %86 = arith.mulf %77, %55 : vector<2x32xf32>
    %87 = arith.addf %85, %86 : vector<2x32xf32>
    %88 = arith.index_cast %c1_i32 : i32 to index
    %c0_26 = arith.constant 0 : index
    %c0_27 = arith.constant 0 : index
    %89 = vector.load %arg7[%88, %c0_26, %c0_27] : memref<4x2x32xf32, #tpu.memory_space<vmem>>, vector<1x2x32xf32>
    %90 = vector.shape_cast %89 : vector<1x2x32xf32> to vector<2x32xf32>
    %91 = vector.shape_cast %87 : vector<2x32xf32> to vector<1x2x32xf32>
    tpu.vector_store %arg7[%88, %c0_26, %c0_27], %91 {strides = array<i32>} : memref<4x2x32xf32, #tpu.memory_space<vmem>>, vector<1x2x32xf32>,
    %c2_i32 = arith.constant 2 : i32
    %92 = arith.index_cast %c2_i32 : i32 to index
    %c0_28 = arith.constant 0 : index
    %c0_29 = arith.constant 0 : index
    %93 = vector.load %arg3[%92, %c0_28, %c0_29] : memref<4x2x1xf32, #tpu.memory_space<vmem>>, vector<1x2x1xf32>
    %94 = vector.shape_cast %93 : vector<1x2x1xf32> to vector<2x1xf32>
    %cst_30 = arith.constant 1.000000e+00 : f32
    %95 = vector.broadcast %cst_30 : f32 to vector<2x1xf32>
    %96 = arith.subf %95, %94 : vector<2x1xf32>
    %97 = vector.broadcast %96 : vector<2x1xf32> to vector<2x32xf32>
    %98 = arith.mulf %87, %97 : vector<2x32xf32>
    %99 = arith.index_cast %c2_i32 : i32 to index
    %c0_31 = arith.constant 0 : index
    %c0_32 = arith.constant 0 : index
    %100 = vector.load %arg2[%99, %c0_31, %c0_32] : memref<4x2x96xf32, #tpu.memory_space<vmem>>, vector<1x2x96xf32>
    %101 = vector.shape_cast %100 : vector<1x2x96xf32> to vector<2x96xf32>
    %cst_33 = arith.constant dense<0.000000e+00> : vector<2x96xf32>
    %102 = tpu.matmul %98, %3, %cst_33 {dimension_numbers = #tpu.dot_dimension_numbers<[1], [0], [0], [1], [0, 0, 1, 1], [], []>} : vector<2x32xf32>, vector<32x96xf32>, vector<2x96xf32> -> vector<2x96xf32>
    %103 = vector.broadcast %4 : vector<1x96xf32> to vector<2x96xf32>
    %104 = arith.addf %102, %103 : vector<2x96xf32>
    %105 = vector.extract_strided_slice %101 {offsets = [0, 0], sizes = [2, 32], strides = [1, 1]} : vector<2x96xf32> to vector<2x32xf32>
    %106 = vector.extract_strided_slice %104 {offsets = [0, 0], sizes = [2, 32], strides = [1, 1]} : vector<2x96xf32> to vector<2x32xf32>
    %107 = arith.addf %105, %106 : vector<2x32xf32>
    %108 = arith.negf %107 : vector<2x32xf32>
    %109 = math.exp %108 : vector<2x32xf32>
    %cst_34 = arith.constant 1.000000e+00 : f32
    %110 = vector.broadcast %cst_34 : f32 to vector<2x32xf32>
    %111 = arith.addf %110, %109 : vector<2x32xf32>
    %112 = arith.divf %110, %111 : vector<2x32xf32>
    %113 = vector.extract_strided_slice %101 {offsets = [0, 32], sizes = [2, 32], strides = [1, 1]} : vector<2x96xf32> to vector<2x32xf32>
    %114 = vector.extract_strided_slice %104 {offsets = [0, 32], sizes = [2, 32], strides = [1, 1]} : vector<2x96xf32> to vector<2x32xf32>
    %115 = arith.addf %113, %114 : vector<2x32xf32>
    %116 = arith.negf %115 : vector<2x32xf32>
    %117 = math.exp %116 : vector<2x32xf32>
    %cst_35 = arith.constant 1.000000e+00 : f32
    %118 = vector.broadcast %cst_35 : f32 to vector<2x32xf32>
    %119 = arith.addf %118, %117 : vector<2x32xf32>
    %120 = arith.divf %118, %119 : vector<2x32xf32>
    %121 = vector.extract_strided_slice %101 {offsets = [0, 64], sizes = [2, 32], strides = [1, 1]} : vector<2x96xf32> to vector<2x32xf32>
    %122 = vector.extract_strided_slice %104 {offsets = [0, 64], sizes = [2, 32], strides = [1, 1]} : vector<2x96xf32> to vector<2x32xf32>
    %123 = arith.mulf %112, %122 : vector<2x32xf32>
    %124 = arith.addf %121, %123 : vector<2x32xf32>
    %125 = math.tanh %124 : vector<2x32xf32>
    %cst_36 = arith.constant 1.000000e+00 : f32
    %126 = vector.broadcast %cst_36 : f32 to vector<2x32xf32>
    %127 = arith.subf %126, %120 : vector<2x32xf32>
    %128 = arith.mulf %127, %125 : vector<2x32xf32>
    %129 = arith.mulf %120, %98 : vector<2x32xf32>
    %130 = arith.addf %128, %129 : vector<2x32xf32>
    %131 = arith.index_cast %c2_i32 : i32 to index
    %c0_37 = arith.constant 0 : index
    %c0_38 = arith.constant 0 : index
    %132 = vector.load %arg7[%131, %c0_37, %c0_38] : memref<4x2x32xf32, #tpu.memory_space<vmem>>, vector<1x2x32xf32>
    %133 = vector.shape_cast %132 : vector<1x2x32xf32> to vector<2x32xf32>
    %134 = vector.shape_cast %130 : vector<2x32xf32> to vector<1x2x32xf32>
    tpu.vector_store %arg7[%131, %c0_37, %c0_38], %134 {strides = array<i32>} : memref<4x2x32xf32, #tpu.memory_space<vmem>>, vector<1x2x32xf32>,
    %c3_i32 = arith.constant 3 : i32
    %135 = arith.index_cast %c3_i32 : i32 to index
    %c0_39 = arith.constant 0 : index
    %c0_40 = arith.constant 0 : index
    %136 = vector.load %arg3[%135, %c0_39, %c0_40] : memref<4x2x1xf32, #tpu.memory_space<vmem>>, vector<1x2x1xf32>
    %137 = vector.shape_cast %136 : vector<1x2x1xf32> to vector<2x1xf32>
    %cst_41 = arith.constant 1.000000e+00 : f32
    %138 = vector.broadcast %cst_41 : f32 to vector<2x1xf32>
    %139 = arith.subf %138, %137 : vector<2x1xf32>
    %140 = vector.broadcast %139 : vector<2x1xf32> to vector<2x32xf32>
    %141 = arith.mulf %130, %140 : vector<2x32xf32>
    %142 = arith.index_cast %c3_i32 : i32 to index
    %c0_42 = arith.constant 0 : index
    %c0_43 = arith.constant 0 : index
    %143 = vector.load %arg2[%142, %c0_42, %c0_43] : memref<4x2x96xf32, #tpu.memory_space<vmem>>, vector<1x2x96xf32>
    %144 = vector.shape_cast %143 : vector<1x2x96xf32> to vector<2x96xf32>
    %cst_44 = arith.constant dense<0.000000e+00> : vector<2x96xf32>
    %145 = tpu.matmul %141, %3, %cst_44 {dimension_numbers = #tpu.dot_dimension_numbers<[1], [0], [0], [1], [0, 0, 1, 1], [], []>} : vector<2x32xf32>, vector<32x96xf32>, vector<2x96xf32> -> vector<2x96xf32>
    %146 = vector.broadcast %4 : vector<1x96xf32> to vector<2x96xf32>
    %147 = arith.addf %145, %146 : vector<2x96xf32>
    %148 = vector.extract_strided_slice %144 {offsets = [0, 0], sizes = [2, 32], strides = [1, 1]} : vector<2x96xf32> to vector<2x32xf32>
    %149 = vector.extract_strided_slice %147 {offsets = [0, 0], sizes = [2, 32], strides = [1, 1]} : vector<2x96xf32> to vector<2x32xf32>
    %150 = arith.addf %148, %149 : vector<2x32xf32>
    %151 = arith.negf %150 : vector<2x32xf32>
    %152 = math.exp %151 : vector<2x32xf32>
    %cst_45 = arith.constant 1.000000e+00 : f32
    %153 = vector.broadcast %cst_45 : f32 to vector<2x32xf32>
    %154 = arith.addf %153, %152 : vector<2x32xf32>
    %155 = arith.divf %153, %154 : vector<2x32xf32>
    %156 = vector.extract_strided_slice %144 {offsets = [0, 32], sizes = [2, 32], strides = [1, 1]} : vector<2x96xf32> to vector<2x32xf32>
    %157 = vector.extract_strided_slice %147 {offsets = [0, 32], sizes = [2, 32], strides = [1, 1]} : vector<2x96xf32> to vector<2x32xf32>
    %158 = arith.addf %156, %157 : vector<2x32xf32>
    %159 = arith.negf %158 : vector<2x32xf32>
    %160 = math.exp %159 : vector<2x32xf32>
    %cst_46 = arith.constant 1.000000e+00 : f32
    %161 = vector.broadcast %cst_46 : f32 to vector<2x32xf32>
    %162 = arith.addf %161, %160 : vector<2x32xf32>
    %163 = arith.divf %161, %162 : vector<2x32xf32>
    %164 = vector.extract_strided_slice %144 {offsets = [0, 64], sizes = [2, 32], strides = [1, 1]} : vector<2x96xf32> to vector<2x32xf32>
    %165 = vector.extract_strided_slice %147 {offsets = [0, 64], sizes = [2, 32], strides = [1, 1]} : vector<2x96xf32> to vector<2x32xf32>
    %166 = arith.mulf %155, %165 : vector<2x32xf32>
    %167 = arith.addf %164, %166 : vector<2x32xf32>
    %168 = math.tanh %167 : vector<2x32xf32>
    %cst_47 = arith.constant 1.000000e+00 : f32
    %169 = vector.broadcast %cst_47 : f32 to vector<2x32xf32>
    %170 = arith.subf %169, %163 : vector<2x32xf32>
    %171 = arith.mulf %170, %168 : vector<2x32xf32>
    %172 = arith.mulf %163, %141 : vector<2x32xf32>
    %173 = arith.addf %171, %172 : vector<2x32xf32>
    %174 = arith.index_cast %c3_i32 : i32 to index
    %c0_48 = arith.constant 0 : index
    %c0_49 = arith.constant 0 : index
    %175 = vector.load %arg7[%174, %c0_48, %c0_49] : memref<4x2x32xf32, #tpu.memory_space<vmem>>, vector<1x2x32xf32>
    %176 = vector.shape_cast %175 : vector<1x2x32xf32> to vector<2x32xf32>
    %177 = vector.shape_cast %173 : vector<2x32xf32> to vector<1x2x32xf32>
    tpu.vector_store %arg7[%174, %c0_48, %c0_49], %177 {strides = array<i32>} : memref<4x2x32xf32, #tpu.memory_space<vmem>>, vector<1x2x32xf32>,
    %c4_i32 = arith.constant 4 : i32
    %c0_50 = arith.constant 0 : index
    %c0_51 = arith.constant 0 : index
    %178 = vector.load %arg8[%c0_50, %c0_51] : memref<2x32xf32, #tpu.memory_space<vmem>>, vector<2x32xf32>
    tpu.vector_store %arg8[%c0_50, %c0_51], %173 {strides = array<i32>} : memref<2x32xf32, #tpu.memory_space<vmem>>, vector<2x32xf32>,
    return
  }
  func.func @transform_0(%arg0: i32, %arg1: i32) -> (i32, i32, i32) {
    %c0_i32 = arith.constant 0 : i32
    %c0_i32_0 = arith.constant 0 : i32
    return %arg1, %arg0, %c0_i32 : i32, i32, i32
  }
  func.func @transform_1(%arg0: i32, %arg1: i32) -> (i32, i32, i32) {
    %c0_i32 = arith.constant 0 : i32
    %c0_i32_0 = arith.constant 0 : i32
    return %arg1, %arg0, %c0_i32 : i32, i32, i32
  }
  func.func @transform_2(%arg0: i32, %arg1: i32) -> (i32, i32) {
    %c0_i32 = arith.constant 0 : i32
    %c0_i32_0 = arith.constant 0 : i32
    return %arg0, %c0_i32 : i32, i32
  }
  func.func @transform_3(%arg0: i32, %arg1: i32) -> (i32, i32) {
    %c0_i32 = arith.constant 0 : i32
    %c0_i32_0 = arith.constant 0 : i32
    %c0_i32_1 = arith.constant 0 : i32
    return %c0_i32, %c0_i32_0 : i32, i32
  }
  func.func @transform_4(%arg0: i32, %arg1: i32) -> (i32, i32) {
    %c0_i32 = arith.constant 0 : i32
    %c0_i32_0 = arith.constant 0 : i32
    %c0_i32_1 = arith.constant 0 : i32
    return %c0_i32, %c0_i32_0 : i32, i32
  }
  func.func @transform_5(%arg0: i32, %arg1: i32) -> (i32, i32, i32) {
    %c0_i32 = arith.constant 0 : i32
    %c0_i32_0 = arith.constant 0 : i32
    return %arg1, %arg0, %c0_i32 : i32, i32, i32
  }
}

</mosaic_0001>

<llo_original>
// kernel: tpu_custom_call.1
$region0: #{tpu_custom_call.1}
  #allocation0 [shape = 'u32[]', space=smem, size = 0x4, offset = 0x4, fixed_abs, tag = 'smem constant byte address 0x4 - core index']
  #allocation1 [shape = 'u32[144,128]{1,0:T(1,128)}', space=vmem, size = 0x12000, scoped, tag = 'internal scratch']
  #allocation2 [shape = 'f32[2,32]{1,0:T(2,128)}', space=vmem, size = 0x400, scoped, tag = 'scratch operand']
  %s0 = inlined_call_operand.vmem [shape: f32[4,2,96], index: 0, kind: input, shape index: {}]
  %s1 = inlined_call_operand.vmem [shape: f32[4,2,1], index: 1, kind: input, shape index: {}]
  %s2 = inlined_call_operand.vmem [shape: f32[2,32], index: 2, kind: input, shape index: {}]
  %s3 = inlined_call_operand.hbm [shape: f32[32,96], index: 3, kind: input, shape index: {}]
  %s4 = inlined_call_operand.vmem [shape: f32[1,96], index: 4, kind: input, shape index: {}]
  %s5 = inlined_call_operand.hbm [shape: f32[4,2,32], index: 5, kind: output, shape index: {}]
  %s6 = sld [smem:[#allocation0]]
  $region38: #{tpu_custom_call.1} parent=0
    _
  %s8 = ssub.s32 1, %s6
  %s9 = scalar_select 0, %s8, %s6
  $region1: #{tpu_custom_call.1} parent=0
    #allocation3 [shape = 'u8[16384]{0}', space=vmem, size = 0x4000, scoped, tag = 'input window, operand 3, single buffered']
    #allocation4 [shape = 's32[1]{0}', space=sflag, size = 0x4, scoped, tag = 'scoped memory for tpu_custom_call.1']
    #allocation5 [shape = 's32[1]{0}', space=sflag, size = 0x4, scoped, tag = 'scoped memory for tpu_custom_call.1']
    #allocation6 [shape = 'u8[4096]{0}', space=vmem, size = 0x1000, scoped, tag = 'output window, operand 0, single buffered']
    %10 = vsyncpa [#allocation4], 0
    %11 = vsyncpa [#allocation5], 0
    // Predicated region
    $region2: #{tpu_custom_call.1} parent=1 // pred_check
      _
    $region3: #{tpu_custom_call.1} parent=1 // pred_check_branch
      %13 = sbr.rel (0) target = $region5
    $region4: #{tpu_custom_call.1} parent=1 // pred_region
      _
    $region5: #{tpu_custom_call.1} parent=1 // pred_fallthru
      _
    // Predicated region
    $region6: #{tpu_custom_call.1} parent=1 // pred_check
      _
    $region7: #{tpu_custom_call.1} parent=1 // pred_check_branch
      %15 = sbr.rel (0) target = $region9
    $region8: #{tpu_custom_call.1} parent=1 // pred_region
      _
    $region9: #{tpu_custom_call.1} parent=1 // pred_fallthru
      _
    // Predicated region
    $region10: #{tpu_custom_call.1} parent=1 // pred_check
      _
    $region11: #{tpu_custom_call.1} parent=1 // pred_check_branch
      %17 = sbr.rel (0) target = $region13
    $region12: #{tpu_custom_call.1} parent=1 // pred_region
      _
    $region13: #{tpu_custom_call.1} parent=1 // pred_fallthru
      _
    // Predicated region
    $region14: #{tpu_custom_call.1} parent=1 // pred_check
      _
    $region15: #{tpu_custom_call.1} parent=1 // pred_check_branch
      %19 = sbr.rel (0) target = $region17
    $region16: #{tpu_custom_call.1} parent=1 // pred_region
      %s21 = ssub.s32 512, 512
      %22 = vsyncadd [#allocation4], %s21
      %s23 = sshll.u32 [#allocation3], 4
      %s24 = int_to_ptr.vmem [resolvable:$true] %s23
      %29 = dma.hbm_to_vmem [thread:$0]  %s3, 512, %s24, [#allocation4], 128, 128, 8
    $region17: #{tpu_custom_call.1} parent=1 // pred_fallthru
      _
    // Predicated region
    $region18: #{tpu_custom_call.1} parent=1 // pred_check
      _
    $region19: #{tpu_custom_call.1} parent=1 // pred_check_branch
      %31 = sbr.rel (0) target = $region21
    $region20: #{tpu_custom_call.1} parent=1 // pred_region
      _
    $region21: #{tpu_custom_call.1} parent=1 // pred_fallthru
      _
    // Predicated region
    $region22: #{tpu_custom_call.1} parent=1 // pred_check
      _
    $region23: #{tpu_custom_call.1} parent=1 // pred_check_branch
      %33 = sbr.rel (0) target = $region25
    $region24: #{tpu_custom_call.1} parent=1 // pred_region
      %34 = dma.done [#allocation4], 512
    $region25: #{tpu_custom_call.1} parent=1 // pred_fallthru
      _
    %p35 = scmp.eq.s32.totalorder 0, 0
    // Predicated region
    $region26: #{tpu_custom_call.1} parent=1 // pred_check
      %p36 = pneg %p35
    $region27: #{tpu_custom_call.1} parent=1 // pred_check_branch
      %38 = sbr.rel (%p36) target = $region29
    $region28: #{tpu_custom_call.1} parent=1 // pred_region
      %v39 = vld [vmem:[%s2] sm:$0x3]
      %vm40 = vcmask 254976
      %41 = vst.msk [vmem:[#allocation2] sm:$0x3] %vm40, %v39
    $region29: #{tpu_custom_call.1} parent=1 // pred_fallthru
      _
    %v42 = vld [vmem:[#allocation3] sm:$0xff]
    %v43 = vld [vmem:[#allocation3 + $0x8] sm:$0xff]
    %v44 = vld [vmem:[#allocation3 + $0x10] sm:$0xff]
    %v45 = vld [vmem:[#allocation3 + $0x18] sm:$0xff]
    %v46 = vld [vmem:[%s4] sm:$0x1]
    %v47 = vld [vmem:[#allocation2] sm:$0x3]
    %v48 = vld [vmem:[%s1] sm:$0x3]
    %v49 = vsub.f32 1.0, %v48
    %51 = vset.pattern.permute.xlu0 0
    %52 = vperm.xlu0 %51, %v49
    %v53 = vpop.permute.xlu0 %52
    %v55 = vmul.f32 %v47, %v53
    %v56 = vld [vmem:[%s0] sm:$0x3]
    %v58 = vlaneseq
    %v59 = vshrl.u32 %v58, 7
    %v60 = vsub.s32 0, %v59
    %v61 = vrot.slane %v46, %v60
    %vm63 = vcmask 261120
    %v65 = vsel %vm63, %v55, 0
    %67 = vmatprep.subr.mxu0 0.0
    %68 = vmatpush1.msra.mxu0 %v42
    %69 = vmatprep.subr.mxu0 0.0
    %70 = vmatpush1.msra.mxu0 %v43
    %71 = vmatprep.subr.mxu0 0.0
    %72 = vmatpush1.msra.mxu0 %v44
    %73 = vmatprep.subr.mxu0 0.0
    %74 = vmatpush1.msra.mxu0 %v45
    %75 = vmatprep.subr.mxu0 0.0
    %76 = vmatpush1.msra.mxu0 0.0
    %77 = vmatprep.subr.mxu0 0.0
    %78 = vmatpush1.msra.mxu0 0.0
    %79 = vmatprep.subr.mxu0 0.0
    %80 = vmatpush1.msra.mxu0 0.0
    %81 = vmatprep.subr.mxu0 0.0
    %82 = vmatpush1.msra.mxu0 0.0
    %83 = vmatprep.subr.mxu0 0.0
    %84 = vmatpush1.msra.mxu0 0.0
    %85 = vmatprep.subr.mxu0 0.0
    %86 = vmatpush1.msra.mxu0 0.0
    %87 = vmatprep.subr.mxu0 0.0
    %88 = vmatpush1.msra.mxu0 0.0
    %89 = vmatprep.subr.mxu0 0.0
    %90 = vmatpush1.msra.mxu0 0.0
    %91 = vmatprep.subr.mxu0 0.0
    %92 = vmatpush1.msra.mxu0 0.0
    %93 = vmatprep.subr.mxu0 0.0
    %94 = vmatpush1.msra.mxu0 0.0
    %95 = vmatprep.subr.mxu0 0.0
    %96 = vmatpush1.msra.mxu0 0.0
    %97 = vmatprep.subr.mxu0 0.0
    %98 = vmatpush1.msra.mxu0 0.0
    %99 = vmatprep.subr.mxu0 0.0
    %100 = vmatpush1.msra.mxu0 0.0
    %101 = vmatprep.subr.mxu0 0.0
    %102 = vmatpush1.msra.mxu0 0.0
    %103 = vmatprep.subr.mxu0 0.0
    %104 = vmatpush1.msra.mxu0 0.0
    %105 = vmatprep.subr.mxu0 0.0
    %106 = vmatpush1.msra.mxu0 0.0
    %107 = vmatprep.subr.mxu0 0.0
    %108 = vmatpush1.msra.mxu0 0.0
    %109 = vmatprep.subr.mxu0 0.0
    %110 = vmatpush1.msra.mxu0 0.0
    %111 = vmatprep.subr.mxu0 0.0
    %112 = vmatpush1.msra.mxu0 0.0
    %113 = vmatprep.subr.mxu0 0.0
    %114 = vmatpush1.msra.mxu0 0.0
    %115 = vmatprep.subr.mxu0 0.0
    %116 = vmatpush1.msra.mxu0 0.0
    %117 = vmatprep.subr.mxu0 0.0
    %118 = vmatpush1.msra.mxu0 0.0
    %119 = vmatprep.subr.mxu0 0.0
    %120 = vmatpush1.msra.mxu0 0.0
    %121 = vmatprep.subr.mxu0 0.0
    %122 = vmatpush1.msra.mxu0 0.0
    %123 = vmatprep.subr.mxu0 0.0
    %124 = vmatpush1.msra.mxu0 0.0
    %125 = vmatprep.subr.mxu0 0.0
    %126 = vmatpush1.msra.mxu0 0.0
    %127 = vmatprep.subr.mxu0 0.0
    %128 = vmatpush1.msra.mxu0 0.0
    %129 = vmatprep.subr.mxu0 0.0
    %130 = vmatpush1.msra.mxu0 0.0
    %131 = vmatprep.mubr.f32.mxu0 0.0
    %132 = vmatmul.mubr.f32.gmra.mrb[0].mxu0 %v65
    %v133 = vpop.f32.mrb[0].mxu0
    %v134 = vadd.f32 %v61, %v133
    %v135 = vpop.f32.mrb[0].mxu0
    %136 = vdwg.mxu0
    %v137 = vadd.f32 %v56, %v134
    %v138 = vxor.u32 %v137, 2147483648
    %v139 = vmul.f32 %v138, 1.442695
    %v140 = vpow.pop %v139
    %v141 = vadd.f32 %v140, 1.0
    %v142 = vrcp.pop %v141
    %v143 = vmul.f32 1.0, %v142
    %145 = vrot.lane.b32.xlu0 %v134, 64
    %v146 = vpop.permute.xlu0 %145
    %v148 = vmul.f32 %v143, %v146
    %150 = vrot.lane.b32.xlu0 %v148, 64
    %v151 = vpop.permute.xlu0 %150
    %v153 = vadd.f32 %v56, %v151
    %v154 = vtanh.pop %v153
    %v155 = vsub.f32 1.0, %v143
    %157 = vrot.lane.b32.xlu0 %v154, 96
    %v158 = vpop.permute.xlu0 %157
    %v160 = vmul.f32 %v155, %v158
    %161 = vrot.lane.b32.xlu0 %v55, 32
    %v162 = vpop.permute.xlu0 %161
    %v164 = vmul.f32 %v143, %v162
    %v165 = vadd.f32 %v160, %v164
    %167 = vrot.lane.b32.xlu0 %v165, 96
    %v168 = vpop.permute.xlu0 %167
    %vm170 = vcmask 254976
    %171 = vst.msk [vmem:[#allocation6] sm:$0x3] %vm170, %v168
    %s172 = scalar_lea.vmem %s1, 2
    %v173 = vld [vmem:[%s172] sm:$0x3]
    %v174 = vsub.f32 1.0, %v173
    %176 = vset.pattern.permute.xlu0 0
    %177 = vperm.xlu0 %176, %v174
    %v178 = vpop.permute.xlu0 %177
    %v180 = vmul.f32 %v165, %v178
    %s181 = scalar_lea.vmem %s0, 2
    %v182 = vld [vmem:[%s181] sm:$0x3]
    %184 = vrot.lane.b32.xlu0 %v180, 96
    %v185 = vpop.permute.xlu0 %184
    %v186 = vsel %vm63, %v185, 0
    %188 = vmatprep.subr.mxu0 0.0
    %189 = vmatpush1.msra.mxu0 %v42
    %190 = vmatprep.subr.mxu0 0.0
    %191 = vmatpush1.msra.mxu0 %v43
    %192 = vmatprep.subr.mxu0 0.0
    %193 = vmatpush1.msra.mxu0 %v44
    %194 = vmatprep.subr.mxu0 0.0
    %195 = vmatpush1.msra.mxu0 %v45
    %196 = vmatprep.subr.mxu0 0.0
    %197 = vmatpush1.msra.mxu0 0.0
    %198 = vmatprep.subr.mxu0 0.0
    %199 = vmatpush1.msra.mxu0 0.0
    %200 = vmatprep.subr.mxu0 0.0
    %201 = vmatpush1.msra.mxu0 0.0
    %202 = vmatprep.subr.mxu0 0.0
    %203 = vmatpush1.msra.mxu0 0.0
    %204 = vmatprep.subr.mxu0 0.0
    %205 = vmatpush1.msra.mxu0 0.0
    %206 = vmatprep.subr.mxu0 0.0
    %207 = vmatpush1.msra.mxu0 0.0
    %208 = vmatprep.subr.mxu0 0.0
    %209 = vmatpush1.msra.mxu0 0.0
    %210 = vmatprep.subr.mxu0 0.0
    %211 = vmatpush1.msra.mxu0 0.0
    %212 = vmatprep.subr.mxu0 0.0
    %213 = vmatpush1.msra.mxu0 0.0
    %214 = vmatprep.subr.mxu0 0.0
    %215 = vmatpush1.msra.mxu0 0.0
    %216 = vmatprep.subr.mxu0 0.0
    %217 = vmatpush1.msra.mxu0 0.0
    %218 = vmatprep.subr.mxu0 0.0
    %219 = vmatpush1.msra.mxu0 0.0
    %220 = vmatprep.subr.mxu0 0.0
    %221 = vmatpush1.msra.mxu0 0.0
    %222 = vmatprep.subr.mxu0 0.0
    %223 = vmatpush1.msra.mxu0 0.0
    %224 = vmatprep.subr.mxu0 0.0
    %225 = vmatpush1.msra.mxu0 0.0
    %226 = vmatprep.subr.mxu0 0.0
    %227 = vmatpush1.msra.mxu0 0.0
    %228 = vmatprep.subr.mxu0 0.0
    %229 = vmatpush1.msra.mxu0 0.0
    %230 = vmatprep.subr.mxu0 0.0
    %231 = vmatpush1.msra.mxu0 0.0
    %232 = vmatprep.subr.mxu0 0.0
    %233 = vmatpush1.msra.mxu0 0.0
    %234 = vmatprep.subr.mxu0 0.0
    %235 = vmatpush1.msra.mxu0 0.0
    %236 = vmatprep.subr.mxu0 0.0
    %237 = vmatpush1.msra.mxu0 0.0
    %238 = vmatprep.subr.mxu0 0.0
    %239 = vmatpush1.msra.mxu0 0.0
    %240 = vmatprep.subr.mxu0 0.0
    %241 = vmatpush1.msra.mxu0 0.0
    %242 = vmatprep.subr.mxu0 0.0
    %243 = vmatpush1.msra.mxu0 0.0
    %244 = vmatprep.subr.mxu0 0.0
    %245 = vmatpush1.msra.mxu0 0.0
    %246 = vmatprep.subr.mxu0 0.0
    %247 = vmatpush1.msra.mxu0 0.0
    %248 = vmatprep.subr.mxu0 0.0
    %249 = vmatpush1.msra.mxu0 0.0
    %250 = vmatprep.subr.mxu0 0.0
    %251 = vmatpush1.msra.mxu0 0.0
    %252 = vmatprep.mubr.f32.mxu0 0.0
    %253 = vmatmul.mubr.f32.gmra.mrb[0].mxu0 %v186
    %v254 = vpop.f32.mrb[0].mxu0
    %v255 = vadd.f32 %v61, %v254
    %v256 = vpop.f32.mrb[0].mxu0
    %257 = vdwg.mxu0
    %v258 = vadd.f32 %v182, %v255
    %v259 = vxor.u32 %v258, 2147483648
    %v260 = vmul.f32 %v259, 1.442695
    %v261 = vpow.pop %v260
    %v262 = vadd.f32 %v261, 1.0
    %v263 = vrcp.pop %v262
    %v264 = vmul.f32 1.0, %v263
    %266 = vrot.lane.b32.xlu0 %v255, 64
    %v267 = vpop.permute.xlu0 %266
    %v269 = vmul.f32 %v264, %v267
    %271 = vrot.lane.b32.xlu0 %v269, 64
    %v272 = vpop.permute.xlu0 %271
    %v274 = vadd.f32 %v182, %v272
    %v275 = vtanh.pop %v274
    %v276 = vsub.f32 1.0, %v264
    %278 = vrot.lane.b32.xlu0 %v275, 96
    %v279 = vpop.permute.xlu0 %278
    %v281 = vmul.f32 %v276, %v279
    %v282 = vmul.f32 %v264, %v180
    %v283 = vadd.f32 %v281, %v282
    %285 = vrot.lane.b32.xlu0 %v283, 96
    %v286 = vpop.permute.xlu0 %285
    %s288 = scalar_lea.vmem [#allocation6], 2
    %289 = vst.msk [vmem:[%s288] sm:$0x3] %vm170, %v286
    %s290 = scalar_lea.vmem %s1, 4
    %v291 = vld [vmem:[%s290] sm:$0x3]
    %v292 = vsub.f32 1.0, %v291
    %294 = vset.pattern.permute.xlu0 0
    %295 = vperm.xlu0 %294, %v292
    %v296 = vpop.permute.xlu0 %295
    %v298 = vmul.f32 %v283, %v296
    %s299 = scalar_lea.vmem %s0, 4
    %v300 = vld [vmem:[%s299] sm:$0x3]
    %302 = vrot.lane.b32.xlu0 %v298, 96
    %v303 = vpop.permute.xlu0 %302
    %v304 = vsel %vm63, %v303, 0
    %306 = vmatprep.subr.mxu0 0.0
    %307 = vmatpush1.msra.mxu0 %v42
    %308 = vmatprep.subr.mxu0 0.0
    %309 = vmatpush1.msra.mxu0 %v43
    %310 = vmatprep.subr.mxu0 0.0
    %311 = vmatpush1.msra.mxu0 %v44
    %312 = vmatprep.subr.mxu0 0.0
    %313 = vmatpush1.msra.mxu0 %v45
    %314 = vmatprep.subr.mxu0 0.0
    %315 = vmatpush1.msra.mxu0 0.0
    %316 = vmatprep.subr.mxu0 0.0
    %317 = vmatpush1.msra.mxu0 0.0
    %318 = vmatprep.subr.mxu0 0.0
    %319 = vmatpush1.msra.mxu0 0.0
    %320 = vmatprep.subr.mxu0 0.0
    %321 = vmatpush1.msra.mxu0 0.0
    %322 = vmatprep.subr.mxu0 0.0
    %323 = vmatpush1.msra.mxu0 0.0
    %324 = vmatprep.subr.mxu0 0.0
    %325 = vmatpush1.msra.mxu0 0.0
    %326 = vmatprep.subr.mxu0 0.0
    %327 = vmatpush1.msra.mxu0 0.0
    %328 = vmatprep.subr.mxu0 0.0
    %329 = vmatpush1.msra.mxu0 0.0
    %330 = vmatprep.subr.mxu0 0.0
    %331 = vmatpush1.msra.mxu0 0.0
    %332 = vmatprep.subr.mxu0 0.0
    %333 = vmatpush1.msra.mxu0 0.0
    %334 = vmatprep.subr.mxu0 0.0
    %335 = vmatpush1.msra.mxu0 0.0
    %336 = vmatprep.subr.mxu0 0.0
    %337 = vmatpush1.msra.mxu0 0.0
    %338 = vmatprep.subr.mxu0 0.0
    %339 = vmatpush1.msra.mxu0 0.0
    %340 = vmatprep.subr.mxu0 0.0
    %341 = vmatpush1.msra.mxu0 0.0
    %342 = vmatprep.subr.mxu0 0.0
    %343 = vmatpush1.msra.mxu0 0.0
    %344 = vmatprep.subr.mxu0 0.0
    %345 = vmatpush1.msra.mxu0 0.0
    %346 = vmatprep.subr.mxu0 0.0
    %347 = vmatpush1.msra.mxu0 0.0
    %348 = vmatprep.subr.mxu0 0.0
    %349 = vmatpush1.msra.mxu0 0.0
    %350 = vmatprep.subr.mxu0 0.0
    %351 = vmatpush1.msra.mxu0 0.0
    %352 = vmatprep.subr.mxu0 0.0
    %353 = vmatpush1.msra.mxu0 0.0
    %354 = vmatprep.subr.mxu0 0.0
    %355 = vmatpush1.msra.mxu0 0.0
    %356 = vmatprep.subr.mxu0 0.0
    %357 = vmatpush1.msra.mxu0 0.0
    %358 = vmatprep.subr.mxu0 0.0
    %359 = vmatpush1.msra.mxu0 0.0
    %360 = vmatprep.subr.mxu0 0.0
    %361 = vmatpush1.msra.mxu0 0.0
    %362 = vmatprep.subr.mxu0 0.0
    %363 = vmatpush1.msra.mxu0 0.0
    %364 = vmatprep.subr.mxu0 0.0
    %365 = vmatpush1.msra.mxu0 0.0
    %366 = vmatprep.subr.mxu0 0.0
    %367 = vmatpush1.msra.mxu0 0.0
    %368 = vmatprep.subr.mxu0 0.0
    %369 = vmatpush1.msra.mxu0 0.0
    %370 = vmatprep.mubr.f32.mxu0 0.0
    %371 = vmatmul.mubr.f32.gmra.mrb[0].mxu0 %v304
    %v372 = vpop.f32.mrb[0].mxu0
    %v373 = vadd.f32 %v61, %v372
    %v374 = vpop.f32.mrb[0].mxu0
    %375 = vdwg.mxu0
    %v376 = vadd.f32 %v300, %v373
    %v377 = vxor.u32 %v376, 2147483648
    %v378 = vmul.f32 %v377, 1.442695
    %v379 = vpow.pop %v378
    %v380 = vadd.f32 %v379, 1.0
    %v381 = vrcp.pop %v380
    %v382 = vmul.f32 1.0, %v381
    %384 = vrot.lane.b32.xlu0 %v373, 64
    %v385 = vpop.permute.xlu0 %384
    %v387 = vmul.f32 %v382, %v385
    %389 = vrot.lane.b32.xlu0 %v387, 64
    %v390 = vpop.permute.xlu0 %389
    %v392 = vadd.f32 %v300, %v390
    %v393 = vtanh.pop %v392
    %v394 = vsub.f32 1.0, %v382
    %396 = vrot.lane.b32.xlu0 %v393, 96
    %v397 = vpop.permute.xlu0 %396
    %v399 = vmul.f32 %v394, %v397
    %v400 = vmul.f32 %v382, %v298
    %v401 = vadd.f32 %v399, %v400
    %403 = vrot.lane.b32.xlu0 %v401, 96
    %v404 = vpop.permute.xlu0 %403
    %s406 = scalar_lea.vmem [#allocation6], 4
    %407 = vst.msk [vmem:[%s406] sm:$0x3] %vm170, %v404
    %s408 = scalar_lea.vmem %s1, 6
    %v409 = vld [vmem:[%s408] sm:$0x3]
    %v410 = vsub.f32 1.0, %v409
    %412 = vset.pattern.permute.xlu0 0
    %413 = vperm.xlu0 %412, %v410
    %v414 = vpop.permute.xlu0 %413
    %v416 = vmul.f32 %v401, %v414
    %s417 = scalar_lea.vmem %s0, 6
    %v418 = vld [vmem:[%s417] sm:$0x3]
    %420 = vrot.lane.b32.xlu0 %v416, 96
    %v421 = vpop.permute.xlu0 %420
    %v422 = vsel %vm63, %v421, 0
    %424 = vmatprep.subr.mxu0 0.0
    %425 = vmatpush1.msra.mxu0 %v42
    %426 = vmatprep.subr.mxu0 0.0
    %427 = vmatpush1.msra.mxu0 %v43
    %428 = vmatprep.subr.mxu0 0.0
    %429 = vmatpush1.msra.mxu0 %v44
    %430 = vmatprep.subr.mxu0 0.0
    %431 = vmatpush1.msra.mxu0 %v45
    %432 = vmatprep.subr.mxu0 0.0
    %433 = vmatpush1.msra.mxu0 0.0
    %434 = vmatprep.subr.mxu0 0.0
    %435 = vmatpush1.msra.mxu0 0.0
    %436 = vmatprep.subr.mxu0 0.0
    %437 = vmatpush1.msra.mxu0 0.0
    %438 = vmatprep.subr.mxu0 0.0
    %439 = vmatpush1.msra.mxu0 0.0
    %440 = vmatprep.subr.mxu0 0.0
    %441 = vmatpush1.msra.mxu0 0.0
    %442 = vmatprep.subr.mxu0 0.0
    %443 = vmatpush1.msra.mxu0 0.0
    %444 = vmatprep.subr.mxu0 0.0
    %445 = vmatpush1.msra.mxu0 0.0
    %446 = vmatprep.subr.mxu0 0.0
    %447 = vmatpush1.msra.mxu0 0.0
    %448 = vmatprep.subr.mxu0 0.0
    %449 = vmatpush1.msra.mxu0 0.0
    %450 = vmatprep.subr.mxu0 0.0
    %451 = vmatpush1.msra.mxu0 0.0
    %452 = vmatprep.subr.mxu0 0.0
    %453 = vmatpush1.msra.mxu0 0.0
    %454 = vmatprep.subr.mxu0 0.0
    %455 = vmatpush1.msra.mxu0 0.0
    %456 = vmatprep.subr.mxu0 0.0
    %457 = vmatpush1.msra.mxu0 0.0
    %458 = vmatprep.subr.mxu0 0.0
    %459 = vmatpush1.msra.mxu0 0.0
    %460 = vmatprep.subr.mxu0 0.0
    %461 = vmatpush1.msra.mxu0 0.0
    %462 = vmatprep.subr.mxu0 0.0
    %463 = vmatpush1.msra.mxu0 0.0
    %464 = vmatprep.subr.mxu0 0.0
    %465 = vmatpush1.msra.mxu0 0.0
    %466 = vmatprep.subr.mxu0 0.0
    %467 = vmatpush1.msra.mxu0 0.0
    %468 = vmatprep.subr.mxu0 0.0
    %469 = vmatpush1.msra.mxu0 0.0
    %470 = vmatprep.subr.mxu0 0.0
    %471 = vmatpush1.msra.mxu0 0.0
    %472 = vmatprep.subr.mxu0 0.0
    %473 = vmatpush1.msra.mxu0 0.0
    %474 = vmatprep.subr.mxu0 0.0
    %475 = vmatpush1.msra.mxu0 0.0
    %476 = vmatprep.subr.mxu0 0.0
    %477 = vmatpush1.msra.mxu0 0.0
    %478 = vmatprep.subr.mxu0 0.0
    %479 = vmatpush1.msra.mxu0 0.0
    %480 = vmatprep.subr.mxu0 0.0
    %481 = vmatpush1.msra.mxu0 0.0
    %482 = vmatprep.subr.mxu0 0.0
    %483 = vmatpush1.msra.mxu0 0.0
    %484 = vmatprep.subr.mxu0 0.0
    %485 = vmatpush1.msra.mxu0 0.0
    %486 = vmatprep.subr.mxu0 0.0
    %487 = vmatpush1.msra.mxu0 0.0
    %488 = vmatprep.mubr.f32.mxu0 0.0
    %489 = vmatmul.mubr.f32.gmra.mrb[0].mxu0 %v422
    %v490 = vpop.f32.mrb[0].mxu0
    %v491 = vadd.f32 %v61, %v490
    %v492 = vpop.f32.mrb[0].mxu0
    %493 = vdwg.mxu0
    %v494 = vadd.f32 %v418, %v491
    %v495 = vxor.u32 %v494, 2147483648
    %v496 = vmul.f32 %v495, 1.442695
    %v497 = vpow.pop %v496
    %v498 = vadd.f32 %v497, 1.0
    %v499 = vrcp.pop %v498
    %v500 = vmul.f32 1.0, %v499
    %502 = vrot.lane.b32.xlu0 %v491, 64
    %v503 = vpop.permute.xlu0 %502
    %v505 = vmul.f32 %v500, %v503
    %507 = vrot.lane.b32.xlu0 %v505, 64
    %v508 = vpop.permute.xlu0 %507
    %v510 = vadd.f32 %v418, %v508
    %v511 = vtanh.pop %v510
    %v512 = vsub.f32 1.0, %v500
    %514 = vrot.lane.b32.xlu0 %v511, 96
    %v515 = vpop.permute.xlu0 %514
    %v517 = vmul.f32 %v512, %v515
    %v518 = vmul.f32 %v500, %v416
    %v519 = vadd.f32 %v517, %v518
    %521 = vrot.lane.b32.xlu0 %v519, 96
    %v522 = vpop.permute.xlu0 %521
    %s524 = scalar_lea.vmem [#allocation6], 6
    %525 = vst.msk [vmem:[%s524] sm:$0x3] %vm170, %v522
    %526 = vst.msk [vmem:[#allocation2] sm:$0x3] %vm170, %v522
    // Predicated region
    $region30: #{tpu_custom_call.1} parent=1 // pred_check
      _
    $region31: #{tpu_custom_call.1} parent=1 // pred_check_branch
      %528 = sbr.rel (0) target = $region33
    $region32: #{tpu_custom_call.1} parent=1 // pred_region
      %s530 = ssub.s32 128, 128
      %531 = vsyncadd [#allocation5], %s530
      %s532 = sshll.u32 [#allocation6], 4
      %s533 = int_to_ptr.vmem [resolvable:$true] %s532
      %538 = dma.vmem_to_hbm [thread:$0]  %s533, 128, %s5, [#allocation5], 32, 32, 2
    $region33: #{tpu_custom_call.1} parent=1 // pred_fallthru
      _
    // Predicated region
    $region34: #{tpu_custom_call.1} parent=1 // pred_check
      _
    $region35: #{tpu_custom_call.1} parent=1 // pred_check_branch
      %540 = sbr.rel (0) target = $region37
    $region36: #{tpu_custom_call.1} parent=1 // pred_region
      %541 = dma.done [#allocation5], 128
    $region37: #{tpu_custom_call.1} parent=1 // pred_fallthru
      _
    %542 = vsyncpa [#allocation4], 1
    %543 = vsyncpa [#allocation5], 1

</llo_original>
